<compile_context>
chip_gen: v7x
topology: tpu7x:2x2x1
jax: 0.10.0
libtpu: 0.0.40
codegen_flags: <defaults>
</compile_context>

<pallas_src>
import jax
import jax.numpy as jnp
from jax.experimental import pallas as pl
from jax.experimental.pallas import tpu as pltpu

BN_EPS = 1e-5  # PyTorch BatchNorm1d default


def _round_up(n, m):
    return ((n + m - 1) // m) * m


# ----------------------------------------------------------------------------
# Pallas kernel 1: fused token embedding (+ cls row + eval-mode BN of cls row)
#   per image: row 0 = cls_token + pos_embed[0]   (zero patch row @ W == 0)
#              rows 1..P = patches @ W + conv_b + pos_embed[1..P]
#              rows P+1..P1_pad-1 = 0 (alignment padding)
# ----------------------------------------------------------------------------
def _tokens_kernel(patches_ref, w_ref, tokbias_ref, bn_ref,
                   tok_ref, cls_ref, clsbn_ref):
    bt, p1, k = patches_ref.shape
    dp = w_ref.shape[1]
    # MXU matmul with a real M dimension (bt*P1_pad rows), f32 accumulation.
    proj = jnp.dot(patches_ref[...].reshape(bt * p1, k), w_ref[...],
                   preferred_element_type=jnp.float32)          # (bt*P1p, Dp)
    toks = proj.reshape(bt, p1, dp) + tokbias_ref[...]          # broadcast bias table
    tok_ref[...] = toks.astype(tok_ref.dtype)                   # one aligned bf16 store

    cls = toks[:, 0, :]                                         # (bt, Dp) cls rows
    cls_ref[...] = cls

    # eval-mode BatchNorm1d (running statistics) fused here; rides in VPU slack.
    gamma, beta = bn_ref[0:1, :], bn_ref[1:2, :]
    rmean, rvar = bn_ref[2:3, :], bn_ref[3:4, :]
    clsbn_ref[...] = (cls - rmean) * jax.lax.rsqrt(rvar + BN_EPS) * gamma + beta


def tokens_forward(x, p):
    """NCHW image -> (tokens (Bp,P1p,Dp) bf16, cls_raw (Bp,Dp) f32, cls_bn (Bp,Dp) f32)."""
    B, C, H, W = x.shape
    ph = pw = p["patch"]
    Hp, Wp = H // ph, W // pw
    P = Hp * Wp
    K = C * ph * pw
    Dp = p["Dp"]
    P1_pad = p["P1_pad"]
    assert P == p["P"], "image size inconsistent with params"

    # TODO(synk): fold this patchify permute into the kernel's DMA (grid over
    # (B, Hp) with an NCHW BlockSpec / strided gather) at production image
    # sizes -- highest value on v5e where it is an extra HBM pass.
    patches = (x.astype(jnp.bfloat16)
                 .reshape(B, C, Hp, ph, Wp, pw)
                 .transpose(0, 2, 4, 1, 3, 5)
                 .reshape(B, P, K))

    # Batch bt images per grid step so bt*P1_pad ~ 256 MXU rows; VMEM per step
    # stays far below the scoped limit on every generation.
    bt = min(B, max(1, 256 // P1_pad))
    Bpad = _round_up(B, bt)
    # Prepend a zero patch row (-> cls row 0) and zero-pad token/batch axes so
    # the kernel's store is one full aligned tile.
    patches_p = jnp.pad(patches, ((0, Bpad - B), (1, P1_pad - 1 - P), (0, 0)))

    tokens, cls_raw, cls_bn = pl.pallas_call(
        _tokens_kernel,
        out_shape=(
            jax.ShapeDtypeStruct((Bpad, P1_pad, Dp), jnp.bfloat16),
            jax.ShapeDtypeStruct((Bpad, Dp), jnp.float32),
            jax.ShapeDtypeStruct((Bpad, Dp), jnp.float32),
        ),
        grid=(Bpad // bt,),
        in_specs=[
            pl.BlockSpec((bt, P1_pad, K), lambda b: (b, 0, 0)),   # per-step image block
            pl.BlockSpec((K, Dp), lambda b: (0, 0)),              # embed weight (resident)
            pl.BlockSpec((P1_pad, Dp), lambda b: (0, 0)),         # cls/bias/pos table
            pl.BlockSpec((8, Dp), lambda b: (0, 0)),              # stacked BN table
        ],
        out_specs=[
            pl.BlockSpec((bt, P1_pad, Dp), lambda b: (b, 0, 0)),
            pl.BlockSpec((bt, Dp), lambda b: (b, 0)),
            pl.BlockSpec((bt, Dp), lambda b: (b, 0)),
        ],
        compiler_params=pltpu.CompilerParams(
            dimension_semantics=("parallel",)),                   # megacore sharding
    )(patches_p, p["w_embed"], p["tok_bias"], p["bn_table"])
    return tokens, cls_raw, cls_bn


# ----------------------------------------------------------------------------
# Pallas kernel 2 (training): BatchNorm1d with batch statistics (full batch in
# one block) + bias-free classifier in bf16 (f32 accumulation).
# ----------------------------------------------------------------------------
def _head_train_kernel(cls_ref, bn_ref, wc_ref, score_ref):
    x = cls_ref[...]                                             # (B, Dp) f32
    gamma, beta = bn_ref[0:1, :], bn_ref[1:2, :]
    mean = jnp.mean(x, axis=0, keepdims=True)
    var = jnp.mean(jnp.square(x - mean), axis=0, keepdims=True)  # biased var (BN norm)
    feat = (x - mean) * jax.lax.rsqrt(var + BN_EPS) * gamma + beta
    score_ref[...] = jnp.dot(feat.astype(jnp.bfloat16), wc_ref[...],
                             preferred_element_type=jnp.float32)  # (B, Cp) lane-dense


def head_train(cls_raw, p):
    B, Dp = cls_raw.shape
    Cp = p["Cp"]
    return pl.pallas_call(
        _head_train_kernel,
        out_shape=jax.ShapeDtypeStruct((B, Cp), jnp.float32),
        grid=(1,),
        in_specs=[
            pl.BlockSpec((B, Dp), lambda i: (0, 0)),
            pl.BlockSpec((8, Dp), lambda i: (0, 0)),
            pl.BlockSpec((Dp, Cp), lambda i: (0, 0)),
        ],
        out_specs=pl.BlockSpec((B, Cp), lambda i: (0, 0)),
        compiler_params=pltpu.CompilerParams(dimension_semantics=("arbitrary",)),
    )(cls_raw, p["bn_table"], p["cls_w"])


# ----------------------------------------------------------------------------
# Parameter init (deterministic, mirrors the module's __init__ init rules).
# All kernel-facing tensors are precomputed: reshaped, transposed, lane-padded
# (D -> Dp mult of 128, num_classes -> Cp mult of 128, tokens -> mult of 16).
# ----------------------------------------------------------------------------
def init_params(key, *, img_size=32, patch=16, in_chans=3, embed_dim=192,
                num_classes=8):
    k_conv, k_cls_tok, k_pos, k_clsw = jax.random.split(key, 4)
    D, C, ph = embed_dim, in_chans, patch
    K = C * ph * ph
    P = (img_size // patch) ** 2
    P1_pad = _round_up(P + 1, 16)     # bf16 sublane tile -> aligned token store
    Dp = _round_up(D, 128)            # 192 -> 256: unmasked lane stores
    Cp = _round_up(num_classes, 128)  # 8 -> 128: lane-dense classifier output

    # kaiming_normal_(fan_in) for conv-like weights (weights_init_kaiming)
    conv_w = jax.random.normal(k_conv, (D, C, ph, ph), jnp.float32) * jnp.sqrt(2.0 / K)
    conv_b = jnp.zeros((D,), jnp.float32)
    cls_token = jax.random.normal(k_cls_tok, (1, 1, D), jnp.float32) * 0.02
    pos_embed = jax.random.normal(k_pos, (1, P + 1, D), jnp.float32) * 0.02
    # BatchNorm1d bottleneck: weight=1, bias=0 (weights_init_kaiming) + running stats
    bn_gamma = jnp.ones((D,), jnp.float32)
    bn_beta = jnp.zeros((D,), jnp.float32)
    bn_rmean = jnp.zeros((D,), jnp.float32)
    bn_rvar = jnp.ones((D,), jnp.float32)
    # classifier: normal(std=0.001), bias=False (weights_init_classifier)
    cls_w = jax.random.normal(k_clsw, (num_classes, D), jnp.float32) * 0.001

    # ---- kernel-ready tensors (computed once, not per forward) ----
    w_embed = jnp.zeros((K, Dp), jnp.float32).at[:, :D].set(conv_w.reshape(D, K).T)
    w_embed = w_embed.astype(jnp.bfloat16)

    # token bias table: row 0 = cls_token + pos_embed[0]; rows 1..P = conv_b +
    # pos_embed[1..P]; rows P+1.. = 0 (alignment padding).
    tok_bias = jnp.zeros((P1_pad, Dp), jnp.float32)
    tok_bias = tok_bias.at[0, :D].set(cls_token[0, 0] + pos_embed[0, 0])
    tok_bias = tok_bias.at[1:P + 1, :D].set(conv_b[None, :] + pos_embed[0, 1:])

    # stacked BN table: rows = gamma, beta, running_mean, running_var, 0...
    bn_table = jnp.zeros((8, Dp), jnp.float32)
    bn_table = bn_table.at[0, :D].set(bn_gamma)
    bn_table = bn_table.at[1, :D].set(bn_beta)
    bn_table = bn_table.at[2, :D].set(bn_rmean)
    bn_table = bn_table.at[3, :].set(1.0)          # pad of running var = 1 (keeps rsqrt tame)
    bn_table = bn_table.at[3, :D].set(bn_rvar)

    cls_w_p = jnp.zeros((Dp, Cp), jnp.float32).at[:D, :num_classes].set(cls_w.T)
    cls_w_p = cls_w_p.astype(jnp.bfloat16)

    return dict(
        patch=patch, embed_dim=D, num_classes=num_classes,
        P=P, P1_pad=P1_pad, Dp=Dp, Cp=Cp,
        w_embed=w_embed, tok_bias=tok_bias, bn_table=bn_table, cls_w=cls_w_p,
    )


# ----------------------------------------------------------------------------
# Forward pass (matches build_vim.forward)
# ----------------------------------------------------------------------------
def build_vim_forward(x, p, *, training=True, neck_feat="before"):
    B = x.shape[0]
    D = p["embed_dim"]
    _tokens, cls_raw, cls_bn = tokens_forward(x, p)
    global_feat = cls_raw[:B, :D]                 # == x[:, 0] in PyTorch (pre-BN)
    if training:
        cls_score = head_train(cls_raw[:B], p)[:, :p["num_classes"]]
        return cls_score, global_feat
    if neck_feat == "after":
        # PyTorch eval-mode BatchNorm1d (running statistics), fused in kernel 1.
        return cls_bn[:B, :D]
    return global_feat


# ----------------------------------------------------------------------------
if __name__ == "__main__":
    key = jax.random.PRNGKey(0)
    k_x, k_p = jax.random.split(key)

    B, C, H, W = 2, 3, 32, 32
    num_classes = 8
    embed_dim = 192  # 'deit_tiny_patch16'-class entry of in_plane_dict

    params = init_params(k_p, img_size=H, patch=16, in_chans=C,
                         embed_dim=embed_dim, num_classes=num_classes)
    x = jax.random.normal(k_x, (B, C, H, W), jnp.float32)

    # training path: (cls_score, global_feat)
    cls_score, global_feat = build_vim_forward(x, params, training=True)
    jax.block_until_ready((cls_score, global_feat))
    assert cls_score.shape == (B, num_classes)
    assert global_feat.shape == (B, embed_dim)

    # eval paths
    feat_before = build_vim_forward(x, params, training=False, neck_feat="before")
    feat_after = build_vim_forward(x, params, training=False, neck_feat="after")
    jax.block_until_ready((feat_before, feat_after))
    assert feat_before.shape == (B, embed_dim)
    assert feat_after.shape == (B, embed_dim)

    print("KERNEL_OK")
</pallas_src>

<mosaic_0001>
module attributes {stable_mosaic.version = 11 : i64} {
  func.func @_tokens_kernel(%arg0: i32, %arg1: memref<2x16x768xbf16, #tpu.memory_space<vmem>>, %arg2: memref<768x256xbf16, #tpu.memory_space<vmem>>, %arg3: memref<16x256xf32, #tpu.memory_space<vmem>>, %arg4: memref<8x256xf32, #tpu.memory_space<vmem>>, %arg5: memref<2x16x256xbf16, #tpu.memory_space<vmem>>, %arg6: memref<2x256xf32, #tpu.memory_space<vmem>>, %arg7: memref<2x256xf32, #tpu.memory_space<vmem>>) attributes {dimension_semantics = [#tpu.dimension_semantics<parallel>], iteration_bounds = array<i64: 1>, scalar_prefetch = 0 : i64, scratch_operands = 0 : i64, tpu.core_type = #tpu.core_type<tc>, window_params = [{transform_indices = @transform_0, window_bounds = array<i64: 2, 16, 768>}, {pipeline_mode = #tpu.pipeline_mode<synchronous>, transform_indices = @transform_1, window_bounds = array<i64: 768, 256>}, {pipeline_mode = #tpu.pipeline_mode<synchronous>, transform_indices = @transform_2, window_bounds = array<i64: 16, 256>}, {pipeline_mode = #tpu.pipeline_mode<synchronous>, transform_indices = @transform_3, window_bounds = array<i64: 8, 256>}, {transform_indices = @transform_4, window_bounds = array<i64: 2, 16, 256>}, {transform_indices = @transform_5, window_bounds = array<i64: 2, 256>}, {transform_indices = @transform_6, window_bounds = array<i64: 2, 256>}]} {
    %c0 = arith.constant 0 : index
    %c0_0 = arith.constant 0 : index
    %c0_1 = arith.constant 0 : index
    %0 = vector.load %arg1[%c0, %c0_0, %c0_1] : memref<2x16x768xbf16, #tpu.memory_space<vmem>>, vector<2x16x768xbf16>
    %1 = vector.shape_cast %0 : vector<2x16x768xbf16> to vector<32x768xbf16>
    %c0_2 = arith.constant 0 : index
    %c0_3 = arith.constant 0 : index
    %2 = vector.load %arg2[%c0_2, %c0_3] : memref<768x256xbf16, #tpu.memory_space<vmem>>, vector<768x256xbf16>
    %cst = arith.constant dense<0.000000e+00> : vector<32x256xf32>
    %3 = tpu.matmul %1, %2, %cst {dimension_numbers = #tpu.dot_dimension_numbers<[1], [0], [0], [1], [0, 0, 1, 1], [], []>} : vector<32x768xbf16>, vector<768x256xbf16>, vector<32x256xf32> -> vector<32x256xf32>
    %4 = vector.shape_cast %3 : vector<32x256xf32> to vector<2x16x256xf32>
    %c0_4 = arith.constant 0 : index
    %c0_5 = arith.constant 0 : index
    %5 = vector.load %arg3[%c0_4, %c0_5] : memref<16x256xf32, #tpu.memory_space<vmem>>, vector<16x256xf32>
    %6 = vector.shape_cast %5 : vector<16x256xf32> to vector<1x16x256xf32>
    %7 = vector.broadcast %6 : vector<1x16x256xf32> to vector<2x16x256xf32>
    %8 = arith.addf %4, %7 : vector<2x16x256xf32>
    %9 = arith.truncf %8 : vector<2x16x256xf32> to vector<2x16x256xbf16>
    %c0_6 = arith.constant 0 : index
    %c0_7 = arith.constant 0 : index
    %c0_8 = arith.constant 0 : index
    %10 = vector.load %arg5[%c0_6, %c0_7, %c0_8] : memref<2x16x256xbf16, #tpu.memory_space<vmem>>, vector<2x16x256xbf16>
    tpu.vector_store %arg5[%c0_6, %c0_7, %c0_8], %9 {strides = array<i32>} : memref<2x16x256xbf16, #tpu.memory_space<vmem>>, vector<2x16x256xbf16>,
    %11 = vector.extract_strided_slice %8 {offsets = [0, 0, 0], sizes = [2, 1, 256], strides = [1, 1, 1]} : vector<2x16x256xf32> to vector<2x1x256xf32>
    %12 = vector.shape_cast %11 : vector<2x1x256xf32> to vector<2x256xf32>
    %c0_9 = arith.constant 0 : index
    %c0_10 = arith.constant 0 : index
    %13 = vector.load %arg6[%c0_9, %c0_10] : memref<2x256xf32, #tpu.memory_space<vmem>>, vector<2x256xf32>
    tpu.vector_store %arg6[%c0_9, %c0_10], %12 {strides = array<i32>} : memref<2x256xf32, #tpu.memory_space<vmem>>, vector<2x256xf32>,
    %c0_11 = arith.constant 0 : index
    %c0_12 = arith.constant 0 : index
    %14 = vector.load %arg4[%c0_11, %c0_12] : memref<8x256xf32, #tpu.memory_space<vmem>>, vector<1x256xf32>
    %c1 = arith.constant 1 : index
    %c0_13 = arith.constant 0 : index
    %15 = vector.load %arg4[%c1, %c0_13] : memref<8x256xf32, #tpu.memory_space<vmem>>, vector<1x256xf32>
    %c2 = arith.constant 2 : index
    %c0_14 = arith.constant 0 : index
    %16 = vector.load %arg4[%c2, %c0_14] : memref<8x256xf32, #tpu.memory_space<vmem>>, vector<1x256xf32>
    %c3 = arith.constant 3 : index
    %c0_15 = arith.constant 0 : index
    %17 = vector.load %arg4[%c3, %c0_15] : memref<8x256xf32, #tpu.memory_space<vmem>>, vector<1x256xf32>
    %18 = vector.broadcast %16 : vector<1x256xf32> to vector<2x256xf32>
    %19 = arith.subf %12, %18 : vector<2x256xf32>
    %cst_16 = arith.constant 9.99999974E-6 : f32
    %20 = vector.broadcast %cst_16 : f32 to vector<1x256xf32>
    %21 = arith.addf %17, %20 : vector<1x256xf32>
    %22 = math.rsqrt %21 : vector<1x256xf32>
    %23 = vector.broadcast %22 : vector<1x256xf32> to vector<2x256xf32>
    %24 = arith.mulf %19, %23 : vector<2x256xf32>
    %25 = vector.broadcast %14 : vector<1x256xf32> to vector<2x256xf32>
    %26 = arith.mulf %24, %25 : vector<2x256xf32>
    %27 = vector.broadcast %15 : vector<1x256xf32> to vector<2x256xf32>
    %28 = arith.addf %26, %27 : vector<2x256xf32>
    %c0_17 = arith.constant 0 : index
    %c0_18 = arith.constant 0 : index
    %29 = vector.load %arg7[%c0_17, %c0_18] : memref<2x256xf32, #tpu.memory_space<vmem>>, vector<2x256xf32>
    tpu.vector_store %arg7[%c0_17, %c0_18], %28 {strides = array<i32>} : memref<2x256xf32, #tpu.memory_space<vmem>>, vector<2x256xf32>,
    return
  }
  func.func @transform_0(%arg0: i32) -> (i32, i32, i32) {
    %c0_i32 = arith.constant 0 : i32
    %c0_i32_0 = arith.constant 0 : i32
    %c0_i32_1 = arith.constant 0 : i32
    return %arg0, %c0_i32, %c0_i32_0 : i32, i32, i32
  }
  func.func @transform_1(%arg0: i32) -> (i32, i32) {
    %c0_i32 = arith.constant 0 : i32
    %c0_i32_0 = arith.constant 0 : i32
    %c0_i32_1 = arith.constant 0 : i32
    return %c0_i32, %c0_i32_0 : i32, i32
  }
  func.func @transform_2(%arg0: i32) -> (i32, i32) {
    %c0_i32 = arith.constant 0 : i32
    %c0_i32_0 = arith.constant 0 : i32
    %c0_i32_1 = arith.constant 0 : i32
    return %c0_i32, %c0_i32_0 : i32, i32
  }
  func.func @transform_3(%arg0: i32) -> (i32, i32) {
    %c0_i32 = arith.constant 0 : i32
    %c0_i32_0 = arith.constant 0 : i32
    %c0_i32_1 = arith.constant 0 : i32
    return %c0_i32, %c0_i32_0 : i32, i32
  }
  func.func @transform_4(%arg0: i32) -> (i32, i32, i32) {
    %c0_i32 = arith.constant 0 : i32
    %c0_i32_0 = arith.constant 0 : i32
    %c0_i32_1 = arith.constant 0 : i32
    return %arg0, %c0_i32, %c0_i32_0 : i32, i32, i32
  }
  func.func @transform_5(%arg0: i32) -> (i32, i32) {
    %c0_i32 = arith.constant 0 : i32
    %c0_i32_0 = arith.constant 0 : i32
    return %arg0, %c0_i32 : i32, i32
  }
  func.func @transform_6(%arg0: i32) -> (i32, i32) {
    %c0_i32 = arith.constant 0 : i32
    %c0_i32_0 = arith.constant 0 : i32
    return %arg0, %c0_i32 : i32, i32
  }
}

</mosaic_0001>

<llo_original>
// kernel: tpu_custom_call.1
$region0: #{tpu_custom_call.1}
  #allocation0 [shape = 'u32[]', space=smem, size = 0x4, offset = 0x4, fixed_abs, tag = 'smem constant byte address 0x4 - core index']
  #allocation1 [shape = 'u32[144,128]{1,0:T(1,128)}', space=vmem, size = 0x12000, scoped, tag = 'internal scratch']
  %s0 = inlined_call_operand.hbm [shape: bf16[2,16,768], index: 0, kind: input, shape index: {}]
  %s1 = inlined_call_operand.hbm [shape: bf16[768,256], index: 1, kind: input, shape index: {}]
  %s2 = inlined_call_operand.hbm [shape: f32[16,256], index: 2, kind: input, shape index: {}]
  %s3 = inlined_call_operand.hbm [shape: f32[8,256], index: 3, kind: input, shape index: {}]
  %s4 = inlined_call_operand.hbm [shape: bf16[2,16,256], index: 4, kind: output, shape index: {0}]
  %s5 = inlined_call_operand.hbm [shape: f32[2,256], index: 5, kind: output, shape index: {1}]
  %s6 = inlined_call_operand.hbm [shape: f32[2,256], index: 6, kind: output, shape index: {2}]
  %7 = xla_tuple %s4, %s5, %s6
  %s8 = sld [smem:[#allocation0]]
  $region58: #{tpu_custom_call.1} parent=0
    _
  %s10 = ssub.s32 1, %s8
  %s11 = scalar_select 0, %s10, %s8
  $region1: #{tpu_custom_call.1} parent=0
    #allocation2 [shape = 'u8[49152]{0}', space=vmem, size = 0xc000, scoped, tag = 'input window, operand 0, single buffered']
    #allocation3 [shape = 's32[1]{0}', space=sflag, size = 0x4, scoped, tag = 'scoped memory for tpu_custom_call.1']
    #allocation4 [shape = 's32[1]{0}', space=sflag, size = 0x4, scoped, tag = 'scoped memory for tpu_custom_call.1']
    #allocation5 [shape = 'u8[393216]{0}', space=vmem, size = 0x60000, scoped, tag = 'input window, operand 1, single buffered']
    #allocation6 [shape = 's32[1]{0}', space=sflag, size = 0x4, scoped, tag = 'scoped memory for tpu_custom_call.1']
    #allocation7 [shape = 'u8[16384]{0}', space=vmem, size = 0x4000, scoped, tag = 'input window, operand 2, single buffered']
    #allocation8 [shape = 'u8[8192]{0}', space=vmem, size = 0x2000, scoped, tag = 'input window, operand 3, single buffered']
    #allocation9 [shape = 's32[1]{0}', space=sflag, size = 0x4, scoped, tag = 'scoped memory for tpu_custom_call.1']
    #allocation10 [shape = 'u8[16384]{0}', space=vmem, size = 0x4000, scoped, tag = 'output window, operand 0, single buffered']
    #allocation11 [shape = 'u8[2048]{0}', space=vmem, size = 0x800, scoped, tag = 'output window, operand 1, single buffered']
    #allocation12 [shape = 's32[1]{0}', space=sflag, size = 0x4, scoped, tag = 'scoped memory for tpu_custom_call.1']
    #allocation13 [shape = 'u8[2048]{0}', space=vmem, size = 0x800, scoped, tag = 'output window, operand 2, single buffered']
    %12 = vsyncpa [#allocation3], 0
    %13 = vsyncpa [#allocation6], 0
    %14 = vsyncpa [#allocation9], 0
    %15 = vsyncpa [#allocation4], 0
    %16 = vsyncpa [#allocation12], 0
    // Predicated region
    $region2: #{tpu_custom_call.1} parent=1 // pred_check
      _
    $region3: #{tpu_custom_call.1} parent=1 // pred_check_branch
      %18 = sbr.rel (0) target = $region5
    $region4: #{tpu_custom_call.1} parent=1 // pred_region
      %s20 = ssub.s32 1536, 1536
      %21 = vsyncadd [#allocation3], %s20
      %s22 = sshll.u32 [#allocation2], 4
      %s23 = int_to_ptr.vmem [resolvable:$true] %s22
      %28 = dma.hbm_to_vmem [thread:$0]  %s0, 1536, %s23, [#allocation3], 384, 384, 24
    $region5: #{tpu_custom_call.1} parent=1 // pred_fallthru
      _
    // Predicated region
    $region6: #{tpu_custom_call.1} parent=1 // pred_check
      _
    $region7: #{tpu_custom_call.1} parent=1 // pred_check_branch
      %30 = sbr.rel (0) target = $region9
    $region8: #{tpu_custom_call.1} parent=1 // pred_region
      %s32 = ssub.s32 12288, 12288
      %33 = vsyncadd [#allocation6], %s32
      %s34 = sshll.u32 [#allocation5], 4
      %s35 = int_to_ptr.vmem [resolvable:$true] %s34
      %40 = dma.hbm_to_vmem [thread:$0]  %s1, 12288, %s35, [#allocation6], 128, 128, 8
    $region9: #{tpu_custom_call.1} parent=1 // pred_fallthru
      _
    // Predicated region
    $region10: #{tpu_custom_call.1} parent=1 // pred_check
      _
    $region11: #{tpu_custom_call.1} parent=1 // pred_check_branch
      %42 = sbr.rel (0) target = $region13
    $region12: #{tpu_custom_call.1} parent=1 // pred_region
      %s44 = ssub.s32 512, 512
      %45 = vsyncadd [#allocation6], %s44
      %s46 = sshll.u32 [#allocation7], 4
      %s47 = int_to_ptr.vmem [resolvable:$true] %s46
      %52 = dma.hbm_to_vmem [thread:$0]  %s2, 512, %s47, [#allocation6], 256, 256, 16
    $region13: #{tpu_custom_call.1} parent=1 // pred_fallthru
      _
    // Predicated region
    $region14: #{tpu_custom_call.1} parent=1 // pred_check
      _
    $region15: #{tpu_custom_call.1} parent=1 // pred_check_branch
      %54 = sbr.rel (0) target = $region17
    $region16: #{tpu_custom_call.1} parent=1 // pred_region
      %s56 = ssub.s32 256, 256
      %57 = vsyncadd [#allocation9], %s56
      %s59 = sshll.u32 [#allocation8], 4
      %s60 = int_to_ptr.vmem [resolvable:$true] %s59
      %62 = dma.hbm_to_vmem [thread:$0]  %s3, 256, %s60, [#allocation9]
    $region17: #{tpu_custom_call.1} parent=1 // pred_fallthru
      _
    // Predicated region
    $region18: #{tpu_custom_call.1} parent=1 // pred_check
      _
    $region19: #{tpu_custom_call.1} parent=1 // pred_check_branch
      %64 = sbr.rel (0) target = $region21
    $region20: #{tpu_custom_call.1} parent=1 // pred_region
      %65 = dma.done [#allocation3], 1536
    $region21: #{tpu_custom_call.1} parent=1 // pred_fallthru
      _
    // Predicated region
    $region22: #{tpu_custom_call.1} parent=1 // pred_check
      _
    $region23: #{tpu_custom_call.1} parent=1 // pred_check_branch
      %67 = sbr.rel (0) target = $region25
    $region24: #{tpu_custom_call.1} parent=1 // pred_region
      %68 = dma.done [#allocation6], 12288
    $region25: #{tpu_custom_call.1} parent=1 // pred_fallthru
      _
    // Predicated region
    $region26: #{tpu_custom_call.1} parent=1 // pred_check
      _
    $region27: #{tpu_custom_call.1} parent=1 // pred_check_branch
      %70 = sbr.rel (0) target = $region29
    $region28: #{tpu_custom_call.1} parent=1 // pred_region
      %71 = dma.done [#allocation6], 512
    $region29: #{tpu_custom_call.1} parent=1 // pred_fallthru
      _
    // Predicated region
    $region30: #{tpu_custom_call.1} parent=1 // pred_check
      _
    $region31: #{tpu_custom_call.1} parent=1 // pred_check_branch
      %73 = sbr.rel (0) target = $region33
    $region32: #{tpu_custom_call.1} parent=1 // pred_region
      %74 = dma.done [#allocation9], 256
    $region33: #{tpu_custom_call.1} parent=1 // pred_fallthru
      _
    %v75 = vld [vmem:[#allocation2] sm:$0xff]
    %v76 = vld [vmem:[#allocation2 + $0x8] sm:$0xff]
    %v77 = vld [vmem:[#allocation2 + $0x10] sm:$0xff]
    %v78 = vld [vmem:[#allocation2 + $0x18] sm:$0xff]
    %v79 = vld [vmem:[#allocation2 + $0x20] sm:$0xff]
    %v80 = vld [vmem:[#allocation2 + $0x28] sm:$0xff]
    %v81 = vld [vmem:[#allocation2 + $0x30] sm:$0xff]
    %v82 = vld [vmem:[#allocation2 + $0x38] sm:$0xff]
    %v83 = vld [vmem:[#allocation2 + $0x40] sm:$0xff]
    %v84 = vld [vmem:[#allocation2 + $0x48] sm:$0xff]
    %v85 = vld [vmem:[#allocation2 + $0x50] sm:$0xff]
    %v86 = vld [vmem:[#allocation2 + $0x58] sm:$0xff]
    %v87 = vld [vmem:[#allocation5] sm:$0xff]
    %v88 = vld [vmem:[#allocation5 + $0x8] sm:$0xff]
    %v89 = vld [vmem:[#allocation5 + $0x10] sm:$0xff]
    %v90 = vld [vmem:[#allocation5 + $0x18] sm:$0xff]
    %v91 = vld [vmem:[#allocation5 + $0x20] sm:$0xff]
    %v92 = vld [vmem:[#allocation5 + $0x28] sm:$0xff]
    %v93 = vld [vmem:[#allocation5 + $0x30] sm:$0xff]
    %v94 = vld [vmem:[#allocation5 + $0x38] sm:$0xff]
    %v95 = vld [vmem:[#allocation5 + $0x40] sm:$0xff]
    %v96 = vld [vmem:[#allocation5 + $0x48] sm:$0xff]
    %v97 = vld [vmem:[#allocation5 + $0x50] sm:$0xff]
    %v98 = vld [vmem:[#allocation5 + $0x58] sm:$0xff]
    %v99 = vld [vmem:[#allocation5 + $0x60] sm:$0xff]
    %v100 = vld [vmem:[#allocation5 + $0x68] sm:$0xff]
    %v101 = vld [vmem:[#allocation5 + $0x70] sm:$0xff]
    %v102 = vld [vmem:[#allocation5 + $0x78] sm:$0xff]
    %v103 = vld [vmem:[#allocation5 + $0x80] sm:$0xff]
    %v104 = vld [vmem:[#allocation5 + $0x88] sm:$0xff]
    %v105 = vld [vmem:[#allocation5 + $0x90] sm:$0xff]
    %v106 = vld [vmem:[#allocation5 + $0x98] sm:$0xff]
    %v107 = vld [vmem:[#allocation5 + $0xa0] sm:$0xff]
    %v108 = vld [vmem:[#allocation5 + $0xa8] sm:$0xff]
    %v109 = vld [vmem:[#allocation5 + $0xb0] sm:$0xff]
    %v110 = vld [vmem:[#allocation5 + $0xb8] sm:$0xff]
    %v111 = vld [vmem:[#allocation5 + $0xc0] sm:$0xff]
    %v112 = vld [vmem:[#allocation5 + $0xc8] sm:$0xff]
    %v113 = vld [vmem:[#allocation5 + $0xd0] sm:$0xff]
    %v114 = vld [vmem:[#allocation5 + $0xd8] sm:$0xff]
    %v115 = vld [vmem:[#allocation5 + $0xe0] sm:$0xff]
    %v116 = vld [vmem:[#allocation5 + $0xe8] sm:$0xff]
    %v117 = vld [vmem:[#allocation5 + $0xf0] sm:$0xff]
    %v118 = vld [vmem:[#allocation5 + $0xf8] sm:$0xff]
    %v119 = vld [vmem:[#allocation5 + $0x100] sm:$0xff]
    %v120 = vld [vmem:[#allocation5 + $0x108] sm:$0xff]
    %v121 = vld [vmem:[#allocation5 + $0x110] sm:$0xff]
    %v122 = vld [vmem:[#allocation5 + $0x118] sm:$0xff]
    %v123 = vld [vmem:[#allocation5 + $0x120] sm:$0xff]
    %v124 = vld [vmem:[#allocation5 + $0x128] sm:$0xff]
    %v125 = vld [vmem:[#allocation5 + $0x130] sm:$0xff]
    %v126 = vld [vmem:[#allocation5 + $0x138] sm:$0xff]
    %v127 = vld [vmem:[#allocation5 + $0x140] sm:$0xff]
    %v128 = vld [vmem:[#allocation5 + $0x148] sm:$0xff]
    %v129 = vld [vmem:[#allocation5 + $0x150] sm:$0xff]
    %v130 = vld [vmem:[#allocation5 + $0x158] sm:$0xff]
    %v131 = vld [vmem:[#allocation5 + $0x160] sm:$0xff]
    %v132 = vld [vmem:[#allocation5 + $0x168] sm:$0xff]
    %v133 = vld [vmem:[#allocation5 + $0x170] sm:$0xff]
    %v134 = vld [vmem:[#allocation5 + $0x178] sm:$0xff]
    %v135 = vld [vmem:[#allocation5 + $0x180] sm:$0xff]
    %v136 = vld [vmem:[#allocation5 + $0x188] sm:$0xff]
    %v137 = vld [vmem:[#allocation5 + $0x190] sm:$0xff]
    %v138 = vld [vmem:[#allocation5 + $0x198] sm:$0xff]
    %v139 = vld [vmem:[#allocation5 + $0x1a0] sm:$0xff]
    %v140 = vld [vmem:[#allocation5 + $0x1a8] sm:$0xff]
    %v141 = vld [vmem:[#allocation5 + $0x1b0] sm:$0xff]
    %v142 = vld [vmem:[#allocation5 + $0x1b8] sm:$0xff]
    %v143 = vld [vmem:[#allocation5 + $0x1c0] sm:$0xff]
    %v144 = vld [vmem:[#allocation5 + $0x1c8] sm:$0xff]
    %v145 = vld [vmem:[#allocation5 + $0x1d0] sm:$0xff]
    %v146 = vld [vmem:[#allocation5 + $0x1d8] sm:$0xff]
    %v147 = vld [vmem:[#allocation5 + $0x1e0] sm:$0xff]
    %v148 = vld [vmem:[#allocation5 + $0x1e8] sm:$0xff]
    %v149 = vld [vmem:[#allocation5 + $0x1f0] sm:$0xff]
    %v150 = vld [vmem:[#allocation5 + $0x1f8] sm:$0xff]
    %v151 = vld [vmem:[#allocation5 + $0x200] sm:$0xff]
    %v152 = vld [vmem:[#allocation5 + $0x208] sm:$0xff]
    %v153 = vld [vmem:[#allocation5 + $0x210] sm:$0xff]
    %v154 = vld [vmem:[#allocation5 + $0x218] sm:$0xff]
    %v155 = vld [vmem:[#allocation5 + $0x220] sm:$0xff]
    %v156 = vld [vmem:[#allocation5 + $0x228] sm:$0xff]
    %v157 = vld [vmem:[#allocation5 + $0x230] sm:$0xff]
    %v158 = vld [vmem:[#allocation5 + $0x238] sm:$0xff]
    %v159 = vld [vmem:[#allocation5 + $0x240] sm:$0xff]
    %v160 = vld [vmem:[#allocation5 + $0x248] sm:$0xff]
    %v161 = vld [vmem:[#allocation5 + $0x250] sm:$0xff]
    %v162 = vld [vmem:[#allocation5 + $0x258] sm:$0xff]
    %v163 = vld [vmem:[#allocation5 + $0x260] sm:$0xff]
    %v164 = vld [vmem:[#allocation5 + $0x268] sm:$0xff]
    %v165 = vld [vmem:[#allocation5 + $0x270] sm:$0xff]
    %v166 = vld [vmem:[#allocation5 + $0x278] sm:$0xff]
    %v167 = vld [vmem:[#allocation5 + $0x280] sm:$0xff]
    %v168 = vld [vmem:[#allocation5 + $0x288] sm:$0xff]
    %v169 = vld [vmem:[#allocation5 + $0x290] sm:$0xff]
    %v170 = vld [vmem:[#allocation5 + $0x298] sm:$0xff]
    %v171 = vld [vmem:[#allocation5 + $0x2a0] sm:$0xff]
    %v172 = vld [vmem:[#allocation5 + $0x2a8] sm:$0xff]
    %v173 = vld [vmem:[#allocation5 + $0x2b0] sm:$0xff]
    %v174 = vld [vmem:[#allocation5 + $0x2b8] sm:$0xff]
    %v175 = vld [vmem:[#allocation5 + $0x2c0] sm:$0xff]
    %v176 = vld [vmem:[#allocation5 + $0x2c8] sm:$0xff]
    %v177 = vld [vmem:[#allocation5 + $0x2d0] sm:$0xff]
    %v178 = vld [vmem:[#allocation5 + $0x2d8] sm:$0xff]
    %v179 = vld [vmem:[#allocation5 + $0x2e0] sm:$0xff]
    %v180 = vld [vmem:[#allocation5 + $0x2e8] sm:$0xff]
    %v181 = vld [vmem:[#allocation5 + $0x2f0] sm:$0xff]
    %v182 = vld [vmem:[#allocation5 + $0x2f8] sm:$0xff]
    %v195 = vunpack.c.l.b16 %v75
    %v196 = vunpack.c.h.b16 %v75
    %v197 = vunpack.c.l.b16 %v76
    %v198 = vunpack.c.h.b16 %v76
    %v199 = vunpack.c.l.b16 %v77
    %v200 = vunpack.c.h.b16 %v77
    %v201 = vunpack.c.l.b16 %v78
    %v202 = vunpack.c.h.b16 %v78
    %v203 = vunpack.c.l.b16 %v79
    %v204 = vunpack.c.h.b16 %v79
    %v205 = vunpack.c.l.b16 %v80
    %v206 = vunpack.c.h.b16 %v80
    %v207 = vunpack.c.l.b16 %v81
    %v208 = vunpack.c.h.b16 %v81
    %v209 = vunpack.c.l.b16 %v82
    %v210 = vunpack.c.h.b16 %v82
    %v211 = vunpack.c.l.b16 %v83
    %v212 = vunpack.c.h.b16 %v83
    %v213 = vunpack.c.l.b16 %v84
    %v214 = vunpack.c.h.b16 %v84
    %v215 = vunpack.c.l.b16 %v85
    %v216 = vunpack.c.h.b16 %v85
    %v217 = vunpack.c.l.b16 %v86
    %v218 = vunpack.c.h.b16 %v86
    %v219 = vpack.c.b16 %v201, %v195
    %v220 = vpack.c.b16 %v202, %v196
    %v221 = vpack.c.b16 %v203, %v197
    %v222 = vpack.c.b16 %v204, %v198
    %v223 = vpack.c.b16 %v205, %v199
    %v224 = vpack.c.b16 %v206, %v200
    %v225 = vpack.c.b16 %v213, %v207
    %v226 = vpack.c.b16 %v214, %v208
    %v227 = vpack.c.b16 %v215, %v209
    %v228 = vpack.c.b16 %v216, %v210
    %v229 = vpack.c.b16 %v217, %v211
    %v230 = vpack.c.b16 %v218, %v212
    %v339 = vunpack.c.l.b16 %v87
    %v340 = vunpack.c.h.b16 %v87
    %v341 = vunpack.c.l.b16 %v88
    %v342 = vunpack.c.h.b16 %v88
    %v343 = vunpack.c.l.b16 %v89
    %v344 = vunpack.c.h.b16 %v89
    %v345 = vunpack.c.l.b16 %v90
    %v346 = vunpack.c.h.b16 %v90
    %v347 = vunpack.c.l.b16 %v91
    %v348 = vunpack.c.h.b16 %v91
    %v349 = vunpack.c.l.b16 %v92
    %v350 = vunpack.c.h.b16 %v92
    %v351 = vunpack.c.l.b16 %v93
    %v352 = vunpack.c.h.b16 %v93
    %v353 = vunpack.c.l.b16 %v94
    %v354 = vunpack.c.h.b16 %v94
    %v355 = vunpack.c.l.b16 %v95
    %v356 = vunpack.c.h.b16 %v95
    %v357 = vunpack.c.l.b16 %v96
    %v358 = vunpack.c.h.b16 %v96
    %v359 = vunpack.c.l.b16 %v97
    %v360 = vunpack.c.h.b16 %v97
    %v361 = vunpack.c.l.b16 %v98
    %v362 = vunpack.c.h.b16 %v98
    %v363 = vunpack.c.l.b16 %v99
    %v364 = vunpack.c.h.b16 %v99
    %v365 = vunpack.c.l.b16 %v100
    %v366 = vunpack.c.h.b16 %v100
    %v367 = vunpack.c.l.b16 %v101
    %v368 = vunpack.c.h.b16 %v101
    %v369 = vunpack.c.l.b16 %v102
    %v370 = vunpack.c.h.b16 %v102
    %v371 = vunpack.c.l.b16 %v103
    %v372 = vunpack.c.h.b16 %v103
    %v373 = vunpack.c.l.b16 %v104
    %v374 = vunpack.c.h.b16 %v104
    %v375 = vunpack.c.l.b16 %v105
    %v376 = vunpack.c.h.b16 %v105
    %v377 = vunpack.c.l.b16 %v106
    %v378 = vunpack.c.h.b16 %v106
    %v379 = vunpack.c.l.b16 %v107
    %v380 = vunpack.c.h.b16 %v107
    %v381 = vunpack.c.l.b16 %v108
    %v382 = vunpack.c.h.b16 %v108
    %v383 = vunpack.c.l.b16 %v109
    %v384 = vunpack.c.h.b16 %v109
    %v385 = vunpack.c.l.b16 %v110
    %v386 = vunpack.c.h.b16 %v110
    %v387 = vunpack.c.l.b16 %v111
    %v388 = vunpack.c.h.b16 %v111
    %v389 = vunpack.c.l.b16 %v112
    %v390 = vunpack.c.h.b16 %v112
    %v391 = vunpack.c.l.b16 %v113
    %v392 = vunpack.c.h.b16 %v113
    %v393 = vunpack.c.l.b16 %v114
    %v394 = vunpack.c.h.b16 %v114
    %v395 = vunpack.c.l.b16 %v115
    %v396 = vunpack.c.h.b16 %v115
    %v397 = vunpack.c.l.b16 %v116
    %v398 = vunpack.c.h.b16 %v116
    %v399 = vunpack.c.l.b16 %v117
    %v400 = vunpack.c.h.b16 %v117
    %v401 = vunpack.c.l.b16 %v118
    %v402 = vunpack.c.h.b16 %v118
    %v403 = vunpack.c.l.b16 %v119
    %v404 = vunpack.c.h.b16 %v119
    %v405 = vunpack.c.l.b16 %v120
    %v406 = vunpack.c.h.b16 %v120
    %v407 = vunpack.c.l.b16 %v121
    %v408 = vunpack.c.h.b16 %v121
    %v409 = vunpack.c.l.b16 %v122
    %v410 = vunpack.c.h.b16 %v122
    %v411 = vunpack.c.l.b16 %v123
    %v412 = vunpack.c.h.b16 %v123
    %v413 = vunpack.c.l.b16 %v124
    %v414 = vunpack.c.h.b16 %v124
    %v415 = vunpack.c.l.b16 %v125
    %v416 = vunpack.c.h.b16 %v125
    %v417 = vunpack.c.l.b16 %v126
    %v418 = vunpack.c.h.b16 %v126
    %v419 = vunpack.c.l.b16 %v127
    %v420 = vunpack.c.h.b16 %v127
    %v421 = vunpack.c.l.b16 %v128
    %v422 = vunpack.c.h.b16 %v128
    %v423 = vunpack.c.l.b16 %v129
    %v424 = vunpack.c.h.b16 %v129
    %v425 = vunpack.c.l.b16 %v130
    %v426 = vunpack.c.h.b16 %v130
    %v427 = vunpack.c.l.b16 %v131
    %v428 = vunpack.c.h.b16 %v131
    %v429 = vunpack.c.l.b16 %v132
    %v430 = vunpack.c.h.b16 %v132
    %v431 = vunpack.c.l.b16 %v133
    %v432 = vunpack.c.h.b16 %v133
    %v433 = vunpack.c.l.b16 %v134
    %v434 = vunpack.c.h.b16 %v134
    %v435 = vunpack.c.l.b16 %v135
    %v436 = vunpack.c.h.b16 %v135
    %v437 = vunpack.c.l.b16 %v136
    %v438 = vunpack.c.h.b16 %v136
    %v439 = vunpack.c.l.b16 %v137
    %v440 = vunpack.c.h.b16 %v137
    %v441 = vunpack.c.l.b16 %v138
    %v442 = vunpack.c.h.b16 %v138
    %v443 = vunpack.c.l.b16 %v139
    %v444 = vunpack.c.h.b16 %v139
    %v445 = vunpack.c.l.b16 %v140
    %v446 = vunpack.c.h.b16 %v140
    %v447 = vunpack.c.l.b16 %v141
    %v448 = vunpack.c.h.b16 %v141
    %v449 = vunpack.c.l.b16 %v142
    %v450 = vunpack.c.h.b16 %v142
    %v451 = vunpack.c.l.b16 %v143
    %v452 = vunpack.c.h.b16 %v143
    %v453 = vunpack.c.l.b16 %v144
    %v454 = vunpack.c.h.b16 %v144
    %v455 = vunpack.c.l.b16 %v145
    %v456 = vunpack.c.h.b16 %v145
    %v457 = vunpack.c.l.b16 %v146
    %v458 = vunpack.c.h.b16 %v146
    %v459 = vunpack.c.l.b16 %v147
    %v460 = vunpack.c.h.b16 %v147
    %v461 = vunpack.c.l.b16 %v148
    %v462 = vunpack.c.h.b16 %v148
    %v463 = vunpack.c.l.b16 %v149
    %v464 = vunpack.c.h.b16 %v149
    %v465 = vunpack.c.l.b16 %v150
    %v466 = vunpack.c.h.b16 %v150
    %v467 = vunpack.c.l.b16 %v151
    %v468 = vunpack.c.h.b16 %v151
    %v469 = vunpack.c.l.b16 %v152
    %v470 = vunpack.c.h.b16 %v152
    %v471 = vunpack.c.l.b16 %v153
    %v472 = vunpack.c.h.b16 %v153
    %v473 = vunpack.c.l.b16 %v154
    %v474 = vunpack.c.h.b16 %v154
    %v475 = vunpack.c.l.b16 %v155
    %v476 = vunpack.c.h.b16 %v155
    %v477 = vunpack.c.l.b16 %v156
    %v478 = vunpack.c.h.b16 %v156
    %v479 = vunpack.c.l.b16 %v157
    %v480 = vunpack.c.h.b16 %v157
    %v481 = vunpack.c.l.b16 %v158
    %v482 = vunpack.c.h.b16 %v158
    %v483 = vunpack.c.l.b16 %v159
    %v484 = vunpack.c.h.b16 %v159
    %v485 = vunpack.c.l.b16 %v160
    %v486 = vunpack.c.h.b16 %v160
    %v487 = vunpack.c.l.b16 %v161
    %v488 = vunpack.c.h.b16 %v161
    %v489 = vunpack.c.l.b16 %v162
    %v490 = vunpack.c.h.b16 %v162
    %v491 = vunpack.c.l.b16 %v163
    %v492 = vunpack.c.h.b16 %v163
    %v493 = vunpack.c.l.b16 %v164
    %v494 = vunpack.c.h.b16 %v164
    %v495 = vunpack.c.l.b16 %v165
    %v496 = vunpack.c.h.b16 %v165
    %v497 = vunpack.c.l.b16 %v166
    %v498 = vunpack.c.h.b16 %v166
    %v499 = vunpack.c.l.b16 %v167
    %v500 = vunpack.c.h.b16 %v167
    %v501 = vunpack.c.l.b16 %v168
    %v502 = vunpack.c.h.b16 %v168
    %v503 = vunpack.c.l.b16 %v169
    %v504 = vunpack.c.h.b16 %v169
    %v505 = vunpack.c.l.b16 %v170
    %v506 = vunpack.c.h.b16 %v170
    %v507 = vunpack.c.l.b16 %v171
    %v508 = vunpack.c.h.b16 %v171
    %v509 = vunpack.c.l.b16 %v172
    %v510 = vunpack.c.h.b16 %v172
    %v511 = vunpack.c.l.b16 %v173
    %v512 = vunpack.c.h.b16 %v173
    %v513 = vunpack.c.l.b16 %v174
    %v514 = vunpack.c.h.b16 %v174
    %v515 = vunpack.c.l.b16 %v175
    %v516 = vunpack.c.h.b16 %v175
    %v517 = vunpack.c.l.b16 %v176
    %v518 = vunpack.c.h.b16 %v176
    %v519 = vunpack.c.l.b16 %v177
    %v520 = vunpack.c.h.b16 %v177
    %v521 = vunpack.c.l.b16 %v178
    %v522 = vunpack.c.h.b16 %v178
    %v523 = vunpack.c.l.b16 %v179
    %v524 = vunpack.c.h.b16 %v179
    %v525 = vunpack.c.l.b16 %v180
    %v526 = vunpack.c.h.b16 %v180
    %v527 = vunpack.c.l.b16 %v181
    %v528 = vunpack.c.h.b16 %v181
    %v529 = vunpack.c.l.b16 %v182
    %v530 = vunpack.c.h.b16 %v182
    %v531 = vpack.c.b16 %v341, %v339
    %v532 = vpack.c.b16 %v342, %v340
    %v533 = vpack.c.b16 %v345, %v343
    %v534 = vpack.c.b16 %v346, %v344
    %v535 = vpack.c.b16 %v349, %v347
    %v536 = vpack.c.b16 %v350, %v348
    %v537 = vpack.c.b16 %v353, %v351
    %v538 = vpack.c.b16 %v354, %v352
    %v539 = vpack.c.b16 %v357, %v355
    %v540 = vpack.c.b16 %v358, %v356
    %v541 = vpack.c.b16 %v361, %v359
    %v542 = vpack.c.b16 %v362, %v360
    %v543 = vpack.c.b16 %v365, %v363
    %v544 = vpack.c.b16 %v366, %v364
    %v545 = vpack.c.b16 %v369, %v367
    %v546 = vpack.c.b16 %v370, %v368
    %v547 = vpack.c.b16 %v373, %v371
    %v548 = vpack.c.b16 %v374, %v372
    %v549 = vpack.c.b16 %v377, %v375
    %v550 = vpack.c.b16 %v378, %v376
    %v551 = vpack.c.b16 %v381, %v379
    %v552 = vpack.c.b16 %v382, %v380
    %v553 = vpack.c.b16 %v385, %v383
    %v554 = vpack.c.b16 %v386, %v384
    %v555 = vpack.c.b16 %v389, %v387
    %v556 = vpack.c.b16 %v390, %v388
    %v557 = vpack.c.b16 %v393, %v391
    %v558 = vpack.c.b16 %v394, %v392
    %v559 = vpack.c.b16 %v397, %v395
    %v560 = vpack.c.b16 %v398, %v396
    %v561 = vpack.c.b16 %v401, %v399
    %v562 = vpack.c.b16 %v402, %v400
    %v563 = vpack.c.b16 %v405, %v403
    %v564 = vpack.c.b16 %v406, %v404
    %v565 = vpack.c.b16 %v409, %v407
    %v566 = vpack.c.b16 %v410, %v408
    %v567 = vpack.c.b16 %v413, %v411
    %v568 = vpack.c.b16 %v414, %v412
    %v569 = vpack.c.b16 %v417, %v415
    %v570 = vpack.c.b16 %v418, %v416
    %v571 = vpack.c.b16 %v421, %v419
    %v572 = vpack.c.b16 %v422, %v420
    %v573 = vpack.c.b16 %v425, %v423
    %v574 = vpack.c.b16 %v426, %v424
    %v575 = vpack.c.b16 %v429, %v427
    %v576 = vpack.c.b16 %v430, %v428
    %v577 = vpack.c.b16 %v433, %v431
    %v578 = vpack.c.b16 %v434, %v432
    %v579 = vpack.c.b16 %v437, %v435
    %v580 = vpack.c.b16 %v438, %v436
    %v581 = vpack.c.b16 %v441, %v439
    %v582 = vpack.c.b16 %v442, %v440
    %v583 = vpack.c.b16 %v445, %v443
    %v584 = vpack.c.b16 %v446, %v444
    %v585 = vpack.c.b16 %v449, %v447
    %v586 = vpack.c.b16 %v450, %v448
    %v587 = vpack.c.b16 %v453, %v451
    %v588 = vpack.c.b16 %v454, %v452
    %v589 = vpack.c.b16 %v457, %v455
    %v590 = vpack.c.b16 %v458, %v456
    %v591 = vpack.c.b16 %v461, %v459
    %v592 = vpack.c.b16 %v462, %v460
    %v593 = vpack.c.b16 %v465, %v463
    %v594 = vpack.c.b16 %v466, %v464
    %v595 = vpack.c.b16 %v469, %v467
    %v596 = vpack.c.b16 %v470, %v468
    %v597 = vpack.c.b16 %v473, %v471
    %v598 = vpack.c.b16 %v474, %v472
    %v599 = vpack.c.b16 %v477, %v475
    %v600 = vpack.c.b16 %v478, %v476
    %v601 = vpack.c.b16 %v481, %v479
    %v602 = vpack.c.b16 %v482, %v480
    %v603 = vpack.c.b16 %v485, %v483
    %v604 = vpack.c.b16 %v486, %v484
    %v605 = vpack.c.b16 %v489, %v487
    %v606 = vpack.c.b16 %v490, %v488
    %v607 = vpack.c.b16 %v493, %v491
    %v608 = vpack.c.b16 %v494, %v492
    %v609 = vpack.c.b16 %v497, %v495
    %v610 = vpack.c.b16 %v498, %v496
    %v611 = vpack.c.b16 %v501, %v499
    %v612 = vpack.c.b16 %v502, %v500
    %v613 = vpack.c.b16 %v505, %v503
    %v614 = vpack.c.b16 %v506, %v504
    %v615 = vpack.c.b16 %v509, %v507
    %v616 = vpack.c.b16 %v510, %v508
    %v617 = vpack.c.b16 %v513, %v511
    %v618 = vpack.c.b16 %v514, %v512
    %v619 = vpack.c.b16 %v517, %v515
    %v620 = vpack.c.b16 %v518, %v516
    %v621 = vpack.c.b16 %v521, %v519
    %v622 = vpack.c.b16 %v522, %v520
    %v623 = vpack.c.b16 %v525, %v523
    %v624 = vpack.c.b16 %v526, %v524
    %v625 = vpack.c.b16 %v529, %v527
    %v626 = vpack.c.b16 %v530, %v528
    %723 = vmatprep.subr.bf16.mxu0 %v532
    %724 = vmatpush1.bf16.msra.mxu0 %v531
    %725 = vmatprep.subr.bf16.mxu0 %v534
    %726 = vmatpush1.bf16.msra.mxu0 %v533
    %727 = vmatprep.subr.bf16.mxu0 %v536
    %728 = vmatpush1.bf16.msra.mxu0 %v535
    %729 = vmatprep.subr.bf16.mxu0 %v538
    %730 = vmatpush1.bf16.msra.mxu0 %v537
    %731 = vmatprep.subr.bf16.mxu0 %v540
    %732 = vmatpush1.bf16.msra.mxu0 %v539
    %733 = vmatprep.subr.bf16.mxu0 %v542
    %734 = vmatpush1.bf16.msra.mxu0 %v541
    %735 = vmatprep.subr.bf16.mxu0 %v544
    %736 = vmatpush1.bf16.msra.mxu0 %v543
    %737 = vmatprep.subr.bf16.mxu0 %v546
    %738 = vmatpush1.bf16.msra.mxu0 %v545
    %739 = vmatprep.subr.bf16.mxu0 %v548
    %740 = vmatpush1.bf16.msra.mxu0 %v547
    %741 = vmatprep.subr.bf16.mxu0 %v550
    %742 = vmatpush1.bf16.msra.mxu0 %v549
    %743 = vmatprep.subr.bf16.mxu0 %v552
    %744 = vmatpush1.bf16.msra.mxu0 %v551
    %745 = vmatprep.subr.bf16.mxu0 %v554
    %746 = vmatpush1.bf16.msra.mxu0 %v553
    %747 = vmatprep.subr.bf16.mxu0 %v556
    %748 = vmatpush1.bf16.msra.mxu0 %v555
    %749 = vmatprep.subr.bf16.mxu0 %v558
    %750 = vmatpush1.bf16.msra.mxu0 %v557
    %751 = vmatprep.subr.bf16.mxu0 %v560
    %752 = vmatpush1.bf16.msra.mxu0 %v559
    %753 = vmatprep.subr.bf16.mxu0 %v562
    %754 = vmatpush1.bf16.msra.mxu0 %v561
    %755 = vmatprep.mubr.bf16.mxu0 %v220
    %756 = vmatmul.mubr.bf16.gmra.mrb[0].mxu0 %v219
    %v757 = vpop.f32.mrb[0].mxu0
    %v758 = vadd.f32 0.0, %v757
    %v759 = vpop.f32.mrb[0].mxu0
    %v760 = vadd.f32 0.0, %v759
    %v761 = vpop.f32.mrb[0].mxu0
    %v762 = vadd.f32 0.0, %v761
    %v763 = vpop.f32.mrb[0].mxu0
    %v764 = vadd.f32 0.0, %v763
    %765 = vmatprep.mubr.bf16.mxu0 %v226
    %766 = vmatmul.mubr.bf16.gmra.mrb[0].mxu0 %v225
    %v767 = vpop.f32.mrb[0].mxu0
    %v768 = vadd.f32 0.0, %v767
    %v769 = vpop.f32.mrb[0].mxu0
    %v770 = vadd.f32 0.0, %v769
    %v771 = vpop.f32.mrb[0].mxu0
    %v772 = vadd.f32 0.0, %v771
    %v773 = vpop.f32.mrb[0].mxu0
    %v774 = vadd.f32 0.0, %v773
    %775 = vdwg.mxu0
    %776 = vmatprep.subr.bf16.mxu0 %v564
    %777 = vmatpush1.bf16.msra.mxu0 %v563
    %778 = vmatprep.subr.bf16.mxu0 %v566
    %779 = vmatpush1.bf16.msra.mxu0 %v565
    %780 = vmatprep.subr.bf16.mxu0 %v568
    %781 = vmatpush1.bf16.msra.mxu0 %v567
    %782 = vmatprep.subr.bf16.mxu0 %v570
    %783 = vmatpush1.bf16.msra.mxu0 %v569
    %784 = vmatprep.subr.bf16.mxu0 %v572
    %785 = vmatpush1.bf16.msra.mxu0 %v571
    %786 = vmatprep.subr.bf16.mxu0 %v574
    %787 = vmatpush1.bf16.msra.mxu0 %v573
    %788 = vmatprep.subr.bf16.mxu0 %v576
    %789 = vmatpush1.bf16.msra.mxu0 %v575
    %790 = vmatprep.subr.bf16.mxu0 %v578
    %791 = vmatpush1.bf16.msra.mxu0 %v577
    %792 = vmatprep.subr.bf16.mxu0 %v580
    %793 = vmatpush1.bf16.msra.mxu0 %v579
    %794 = vmatprep.subr.bf16.mxu0 %v582
    %795 = vmatpush1.bf16.msra.mxu0 %v581
    %796 = vmatprep.subr.bf16.mxu0 %v584
    %797 = vmatpush1.bf16.msra.mxu0 %v583
    %798 = vmatprep.subr.bf16.mxu0 %v586
    %799 = vmatpush1.bf16.msra.mxu0 %v585
    %800 = vmatprep.subr.bf16.mxu0 %v588
    %801 = vmatpush1.bf16.msra.mxu0 %v587
    %802 = vmatprep.subr.bf16.mxu0 %v590
    %803 = vmatpush1.bf16.msra.mxu0 %v589
    %804 = vmatprep.subr.bf16.mxu0 %v592
    %805 = vmatpush1.bf16.msra.mxu0 %v591
    %806 = vmatprep.subr.bf16.mxu0 %v594
    %807 = vmatpush1.bf16.msra.mxu0 %v593
    %808 = vmatprep.mubr.bf16.mxu0 %v222
    %809 = vmatmul.mubr.bf16.gmra.mrb[0].mxu0 %v221
    %v810 = vpop.f32.mrb[0].mxu0
    %v811 = vadd.f32 %v758, %v810
    %v812 = vpop.f32.mrb[0].mxu0
    %v813 = vadd.f32 %v760, %v812
    %v814 = vpop.f32.mrb[0].mxu0
    %v815 = vadd.f32 %v762, %v814
    %v816 = vpop.f32.mrb[0].mxu0
    %v817 = vadd.f32 %v764, %v816
    %818 = vmatprep.mubr.bf16.mxu0 %v228
    %819 = vmatmul.mubr.bf16.gmra.mrb[0].mxu0 %v227
    %v820 = vpop.f32.mrb[0].mxu0
    %v821 = vadd.f32 %v768, %v820
    %v822 = vpop.f32.mrb[0].mxu0
    %v823 = vadd.f32 %v770, %v822
    %v824 = vpop.f32.mrb[0].mxu0
    %v825 = vadd.f32 %v772, %v824
    %v826 = vpop.f32.mrb[0].mxu0
    %v827 = vadd.f32 %v774, %v826
    %828 = vdwg.mxu0
    %829 = vmatprep.subr.bf16.mxu0 %v596
    %830 = vmatpush1.bf16.msra.mxu0 %v595
    %831 = vmatprep.subr.bf16.mxu0 %v598
    %832 = vmatpush1.bf16.msra.mxu0 %v597
    %833 = vmatprep.subr.bf16.mxu0 %v600
    %834 = vmatpush1.bf16.msra.mxu0 %v599
    %835 = vmatprep.subr.bf16.mxu0 %v602
    %836 = vmatpush1.bf16.msra.mxu0 %v601
    %837 = vmatprep.subr.bf16.mxu0 %v604
    %838 = vmatpush1.bf16.msra.mxu0 %v603
    %839 = vmatprep.subr.bf16.mxu0 %v606
    %840 = vmatpush1.bf16.msra.mxu0 %v605
    %841 = vmatprep.subr.bf16.mxu0 %v608
    %842 = vmatpush1.bf16.msra.mxu0 %v607
    %843 = vmatprep.subr.bf16.mxu0 %v610
    %844 = vmatpush1.bf16.msra.mxu0 %v609
    %845 = vmatprep.subr.bf16.mxu0 %v612
    %846 = vmatpush1.bf16.msra.mxu0 %v611
    %847 = vmatprep.subr.bf16.mxu0 %v614
    %848 = vmatpush1.bf16.msra.mxu0 %v613
    %849 = vmatprep.subr.bf16.mxu0 %v616
    %850 = vmatpush1.bf16.msra.mxu0 %v615
    %851 = vmatprep.subr.bf16.mxu0 %v618
    %852 = vmatpush1.bf16.msra.mxu0 %v617
    %853 = vmatprep.subr.bf16.mxu0 %v620
    %854 = vmatpush1.bf16.msra.mxu0 %v619
    %855 = vmatprep.subr.bf16.mxu0 %v622
    %856 = vmatpush1.bf16.msra.mxu0 %v621
    %857 = vmatprep.subr.bf16.mxu0 %v624
    %858 = vmatpush1.bf16.msra.mxu0 %v623
    %859 = vmatprep.subr.bf16.mxu0 %v626
    %860 = vmatpush1.bf16.msra.mxu0 %v625
    %861 = vmatprep.mubr.bf16.mxu0 %v224
    %862 = vmatmul.mubr.bf16.gmra.mrb[0].mxu0 %v223
    %v863 = vpop.f32.mrb[0].mxu0
    %v864 = vadd.f32 %v811, %v863
    %v865 = vpop.f32.mrb[0].mxu0
    %v866 = vadd.f32 %v813, %v865
    %v867 = vpop.f32.mrb[0].mxu0
    %v868 = vadd.f32 %v815, %v867
    %v869 = vpop.f32.mrb[0].mxu0
    %v870 = vadd.f32 %v817, %v869
    %871 = vmatprep.mubr.bf16.mxu0 %v230
    %872 = vmatmul.mubr.bf16.gmra.mrb[0].mxu0 %v229
    %v873 = vpop.f32.mrb[0].mxu0
    %v874 = vadd.f32 %v821, %v873
    %v875 = vpop.f32.mrb[0].mxu0
    %v876 = vadd.f32 %v823, %v875
    %v877 = vpop.f32.mrb[0].mxu0
    %v878 = vadd.f32 %v825, %v877
    %v879 = vpop.f32.mrb[0].mxu0
    %v880 = vadd.f32 %v827, %v879
    %881 = vdwg.mxu0
    %v882 = vld [vmem:[#allocation7] sm:$0xff]
    %v883 = vld [vmem:[#allocation7 + $0x8] sm:$0xff]
    %v884 = vld [vmem:[#allocation7 + $0x10] sm:$0xff]
    %v885 = vld [vmem:[#allocation7 + $0x18] sm:$0xff]
    %v886 = vadd.f32 %v864, %v882
    %v887 = vadd.f32 %v866, %v883
    %v888 = vadd.f32 %v868, %v884
    %v889 = vadd.f32 %v870, %v885
    %v890 = vadd.f32 %v874, %v882
    %v891 = vadd.f32 %v876, %v883
    %v892 = vadd.f32 %v878, %v884
    %v893 = vadd.f32 %v880, %v885
    %v894 = vpack.c.bf16 %v888, %v886
    %v895 = vpack.c.bf16 %v889, %v887
    %v896 = vpack.c.bf16 %v892, %v890
    %v897 = vpack.c.bf16 %v893, %v891
    %v902 = vunpack.c.l.b16 %v894
    %v903 = vunpack.c.l.b16 %v895
    %v904 = vunpack.c.h.b16 %v894
    %v905 = vunpack.c.h.b16 %v895
    %v906 = vunpack.c.l.b16 %v896
    %v907 = vunpack.c.l.b16 %v897
    %v908 = vunpack.c.h.b16 %v896
    %v909 = vunpack.c.h.b16 %v897
    %v910 = vpack.c.b16 %v903, %v902
    %v911 = vpack.c.b16 %v905, %v904
    %v912 = vpack.c.b16 %v907, %v906
    %v913 = vpack.c.b16 %v909, %v908
    %918 = vst [vmem:[#allocation10] sm:$0xff] %v910
    %919 = vst [vmem:[#allocation10 + $0x8] sm:$0xff] %v911
    %920 = vst [vmem:[#allocation10 + $0x10] sm:$0xff] %v912
    %921 = vst [vmem:[#allocation10 + $0x18] sm:$0xff] %v913
    %v926 = vcombine.low %v886, %v887
    %v928 = vunpack.c.l.s4 1983009808
    %v929 = vunpack.c.0.s8 %v928
    %v930 = vlaneseq
    %v931 = vshrl.u32 %v930, 7
    %v932 = vsub.s32 %v929, %v931
    %v933 = vrot.slane %v926, %v932
    %v934 = vcombine.low %v890, %v891
    %v936 = vunpack.c.l.s4 1983009808
    %v937 = vunpack.c.0.s8 %v936
    %v938 = vlaneseq
    %v939 = vshrl.u32 %v938, 7
    %v940 = vsub.s32 %v937, %v939
    %v941 = vrot.slane %v934, %v940
    %vm942 = vcmask 1044484
    %v943 = vsel %vm942, %v933, %v933
    %vm944 = vcmask 1046534
    %v945 = vsel %vm944, %v933, %v943
    %v946 = vrot.slane %v941, 7
    %vm947 = vcmask 1041409
    %v948 = vsel %vm947, %v946, %v945
    %vm949 = vcmask 1043459
    %v950 = vsel %vm949, %v946, %v948
    %vm951 = vcmask 1045509
    %v952 = vsel %vm951, %v946, %v950
    %vm953 = vcmask 1047559
    %v954 = vsel %vm953, %v946, %v952
    %956 = vst [vmem:[#allocation11] sm:$0xf] %v954
    %v957 = vld [vmem:[#allocation8] ss:$8 sm:$0x3]
    %s958 = scalar_lea.vmem [#allocation8], 1
    %v959 = vld [vmem:[%s958] ss:$8 sm:$0x3]
    %s960 = scalar_lea.vmem [#allocation8], 2
    %v961 = vld [vmem:[%s960] ss:$8 sm:$0x3]
    %s962 = scalar_lea.vmem [#allocation8], 3
    %v963 = vld [vmem:[%s962] ss:$8 sm:$0x3]
    %v965 = vlaneseq
    %v966 = vshrl.u32 %v965, 7
    %v967 = vsub.s32 0, %v966
    %v968 = vrot.slane %v961, %v967
    %v969 = vlaneseq
    %v970 = vshrl.u32 %v969, 7
    %v971 = vsub.s32 1, %v970
    %v972 = vrot.slane %v961, %v971
    %v975 = vsub.f32 %v886, %v968
    %v976 = vsub.f32 %v887, %v972
    %v977 = vsub.f32 %v890, %v968
    %v978 = vsub.f32 %v891, %v972
    %v979 = vadd.f32 %v963, 1e-05
    %v980 = vrsqrt.pop %v979
    %v982 = vlaneseq
    %v983 = vshrl.u32 %v982, 7
    %v984 = vsub.s32 0, %v983
    %v985 = vrot.slane %v980, %v984
    %v986 = vlaneseq
    %v987 = vshrl.u32 %v986, 7
    %v988 = vsub.s32 1, %v987
    %v989 = vrot.slane %v980, %v988
    %v992 = vmul.f32 %v975, %v985
    %v993 = vmul.f32 %v976, %v989
    %v994 = vmul.f32 %v977, %v985
    %v995 = vmul.f32 %v978, %v989
    %v997 = vlaneseq
    %v998 = vshrl.u32 %v997, 7
    %v999 = vsub.s32 0, %v998
    %v1000 = vrot.slane %v957, %v999
    %v1001 = vlaneseq
    %v1002 = vshrl.u32 %v1001, 7
    %v1003 = vsub.s32 1, %v1002
    %v1004 = vrot.slane %v957, %v1003
    %v1007 = vmul.f32 %v992, %v1000
    %v1008 = vmul.f32 %v993, %v1004
    %v1009 = vmul.f32 %v994, %v1000
    %v1010 = vmul.f32 %v995, %v1004
    %v1012 = vlaneseq
    %v1013 = vshrl.u32 %v1012, 7
    %v1014 = vsub.s32 0, %v1013
    %v1015 = vrot.slane %v959, %v1014
    %v1016 = vlaneseq
    %v1017 = vshrl.u32 %v1016, 7
    %v1018 = vsub.s32 1, %v1017
    %v1019 = vrot.slane %v959, %v1018
    %v1022 = vadd.f32 %v1007, %v1015
    %v1023 = vadd.f32 %v1008, %v1019
    %v1024 = vadd.f32 %v1009, %v1015
    %v1025 = vadd.f32 %v1010, %v1019
    %v1030 = vcombine.low %v1022, %v1023
    %v1032 = vunpack.c.l.s4 1983009808
    %v1033 = vunpack.c.0.s8 %v1032
    %v1034 = vlaneseq
    %v1035 = vshrl.u32 %v1034, 7
    %v1036 = vsub.s32 %v1033, %v1035
    %v1037 = vrot.slane %v1030, %v1036
    %v1038 = vcombine.low %v1024, %v1025
    %v1040 = vunpack.c.l.s4 1983009808
    %v1041 = vunpack.c.0.s8 %v1040
    %v1042 = vlaneseq
    %v1043 = vshrl.u32 %v1042, 7
    %v1044 = vsub.s32 %v1041, %v1043
    %v1045 = vrot.slane %v1038, %v1044
    %v1046 = vsel %vm942, %v1037, %v1037
    %v1047 = vsel %vm944, %v1037, %v1046
    %v1048 = vrot.slane %v1045, 7
    %v1049 = vsel %vm947, %v1048, %v1047
    %v1050 = vsel %vm949, %v1048, %v1049
    %v1051 = vsel %vm951, %v1048, %v1050
    %v1052 = vsel %vm953, %v1048, %v1051
    %1054 = vst [vmem:[#allocation13] sm:$0xf] %v1052
    // Predicated region
    $region34: #{tpu_custom_call.1} parent=1 // pred_check
      _
    $region35: #{tpu_custom_call.1} parent=1 // pred_check_branch
      %1056 = sbr.rel (0) target = $region37
    $region36: #{tpu_custom_call.1} parent=1 // pred_region
      %s1058 = ssub.s32 512, 512
      %1059 = vsyncadd [#allocation4], %s1058
      %s1060 = sshll.u32 [#allocation10], 4
      %s1061 = int_to_ptr.vmem [resolvable:$true] %s1060
      %1066 = dma.vmem_to_hbm [thread:$0]  %s1061, 512, %s4, [#allocation4], 128, 128, 8
    $region37: #{tpu_custom_call.1} parent=1 // pred_fallthru
      _
    // Predicated region
    $region38: #{tpu_custom_call.1} parent=1 // pred_check
      _
    $region39: #{tpu_custom_call.1} parent=1 // pred_check_branch
      %1068 = sbr.rel (0) target = $region41
    $region40: #{tpu_custom_call.1} parent=1 // pred_region
      %s1070 = ssub.s32 64, 64
      %1071 = vsyncadd [#allocation12], %s1070
      %s1073 = sshll.u32 [#allocation11], 4
      %s1074 = int_to_ptr.vmem [resolvable:$true] %s1073
      %1076 = dma.vmem_to_hbm [thread:$0]  %s1074, 64, %s5, [#allocation12]
    $region41: #{tpu_custom_call.1} parent=1 // pred_fallthru
      _
    // Predicated region
    $region42: #{tpu_custom_call.1} parent=1 // pred_check
      _
    $region43: #{tpu_custom_call.1} parent=1 // pred_check_branch
      %1078 = sbr.rel (0) target = $region45
    $region44: #{tpu_custom_call.1} parent=1 // pred_region
      %s1080 = ssub.s32 64, 64
      %1081 = vsyncadd [#allocation12], %s1080
      %s1083 = sshll.u32 [#allocation13], 4
      %s1084 = int_to_ptr.vmem [resolvable:$true] %s1083
      %1086 = dma.vmem_to_hbm [thread:$0]  %s1084, 64, %s6, [#allocation12]
    $region45: #{tpu_custom_call.1} parent=1 // pred_fallthru
      _
    // Predicated region
    $region46: #{tpu_custom_call.1} parent=1 // pred_check
      _
    $region47: #{tpu_custom_call.1} parent=1 // pred_check_branch
      %1088 = sbr.rel (0) target = $region49
    $region48: #{tpu_custom_call.1} parent=1 // pred_region
      %1089 = dma.done [#allocation4], 512
    $region49: #{tpu_custom_call.1} parent=1 // pred_fallthru
      _
    // Predicated region
    $region50: #{tpu_custom_call.1} parent=1 // pred_check
      _
    $region51: #{tpu_custom_call.1} parent=1 // pred_check_branch
      %1091 = sbr.rel (0) target = $region53
    $region52: #{tpu_custom_call.1} parent=1 // pred_region
      %1092 = dma.done [#allocation12], 64
    $region53: #{tpu_custom_call.1} parent=1 // pred_fallthru
      _
    // Predicated region
    $region54: #{tpu_custom_call.1} parent=1 // pred_check
      _
    $region55: #{tpu_custom_call.1} parent=1 // pred_check_branch
      %1094 = sbr.rel (0) target = $region57
    $region56: #{tpu_custom_call.1} parent=1 // pred_region
      %1095 = dma.done [#allocation12], 64
    $region57: #{tpu_custom_call.1} parent=1 // pred_fallthru
      _
    %1096 = vsyncpa [#allocation3], 1
    %1097 = vsyncpa [#allocation6], 1
    %1098 = vsyncpa [#allocation9], 1
    %1099 = vsyncpa [#allocation4], 1
    %1100 = vsyncpa [#allocation12], 1

</llo_original>
